<compile_context>
chip_gen: v5e
topology: v5e:2x2
jax: 0.10.0
libtpu: 0.0.40
codegen_flags: <defaults>
</compile_context>

<pallas_src>
import functools

import jax
import jax.numpy as jnp
from jax.experimental import pallas as pl
from jax.experimental.pallas import tpu as pltpu


def layer_kernel(y_ref, wt_ref, b_ref, o_ref):
    """Fused Linear + ReLU + residual-add for one batch tile.

    y_ref : [tile_b, H]   f32 activations (streamed)
    wt_ref: [H_in, H_out] bf16 weight, pre-transposed once in prepare_params
    b_ref : [1, H_out]    f32 bias (grid-invariant, resident)
    o_ref : [tile_b, H]   output tile
    """
    y = y_ref[...]                                    # f32, kept for the residual
    # MXU matmul: bf16 operands, f32 accumulation.  Weight is already [in, out],
    # so this is a plain last-dim x first-dim contraction (no transpose anywhere).
    x = jnp.dot(y.astype(jnp.bfloat16), wt_ref[...],
                preferred_element_type=jnp.float32)   # [tile_b, H_out] f32
    x = x + b_ref[...]                                # bias broadcast over rows
    # norm = Identity (module default norm=None)
    x = jnp.maximum(x, 0.0)                           # ReLU
    # dropout (eval mode) = identity
    o_ref[...] = (x + y).astype(o_ref.dtype)          # residual add


def prepare_params(weight, bias):
    """One-time parameter prep, OUTSIDE the per-call path.

    weight: PyTorch-layout [out, in] f32 -> [in, out] bf16 (MXU-native)
    bias:   [H] -> [1, H] f32
    """
    wt_bf = jnp.asarray(weight).T.astype(jnp.bfloat16)
    b2d = jnp.asarray(bias).reshape(1, -1).astype(jnp.float32)
    return wt_bf, b2d


@functools.partial(jax.jit, static_argnames=("tile_b", "out_dtype"))
def layer_forward(y, wt_bf, b2d, *, tile_b=512, out_dtype=jnp.float32):
    """y: [B, H] f32; wt_bf: [H, H] bf16 (pre-transposed); b2d: [1, H] f32."""
    B, H = y.shape
    assert wt_bf.shape == (H, H) and b2d.shape == (1, H)

    # Clamp the batch tile; keep the second-to-last block dim a multiple of 8
    # unless it equals the full batch.  No pad / slice: Pallas masks the ragged
    # last block's output writes.
    tb = min(tile_b, B)
    if tb != B:
        tb = max(8, (tb // 8) * 8)
    num_tiles = pl.cdiv(B, tb)

    out_bytes = jnp.dtype(out_dtype).itemsize
    # Residency: bf16 weight + f32 bias + 2x streamed-in tile + 2x out tile.
    resid = (H * H * 2) + (H * 4) + 2 * tb * H * 4 + 2 * tb * H * out_bytes
    vmem_limit = int(min(max(2 * resid + (8 << 20), 32 << 20), 100 << 20))

    cost = pl.CostEstimate(
        flops=2 * B * H * H,
        transcendentals=0,
        bytes_accessed=B * H * 4 + H * H * 2 + H * 4 + B * H * out_bytes,
    )

    return pl.pallas_call(
        layer_kernel,
        out_shape=jax.ShapeDtypeStruct((B, H), out_dtype),
        grid_spec=pltpu.PrefetchScalarGridSpec(
            num_scalar_prefetch=0,
            grid=(num_tiles,),
            in_specs=[
                # streamed activation tile (default double-buffering)
                pl.BlockSpec((tb, H), lambda i: (i, 0)),
                # grid-invariant weight: resident, single-buffered
                pl.BlockSpec((H, H), lambda i: (0, 0),
                             pipeline_mode=pl.Buffered(1)),
                # grid-invariant bias: resident, single-buffered
                pl.BlockSpec((1, H), lambda i: (0, 0),
                             pipeline_mode=pl.Buffered(1)),
            ],
            # lane-dense output (full H=128 multiple in the last dim)
            out_specs=pl.BlockSpec((tb, H), lambda i: (i, 0)),
        ),
        compiler_params=pltpu.CompilerParams(
            dimension_semantics=("parallel",),   # batch tiles shard across TCs
            vmem_limit_bytes=vmem_limit,
        ),
        cost_estimate=cost,
    )(y, wt_bf, b2d)


def layer_forward_ref(y, weight, bias):
    """Pure-JAX f32 reference mirroring the PyTorch module (eval mode)."""
    x = y @ weight.T + bias
    x = jnp.maximum(x, 0.0)
    return x + y


def layer_forward_ref_bf16(y, weight, bias):
    """Reference using the same bf16-operand / f32-accumulate matmul as the kernel."""
    x = jnp.dot(y.astype(jnp.bfloat16), weight.astype(jnp.bfloat16).T,
                preferred_element_type=jnp.float32) + bias
    x = jnp.maximum(x, 0.0)
    return x + y


if __name__ == "__main__":
    hidden_dim = 128
    batch = 200          # NOT a multiple of 128 -> exercises the ragged-last-block path
    drop_prob = 0.1      # unused in eval-mode forward

    key = jax.random.PRNGKey(0)
    k_y, k_w, k_b = jax.random.split(key, 3)

    # Deterministic parameter init (nn.Linear shapes: W [out, in], b [out]).
    bound = 1.0 / jnp.sqrt(hidden_dim)
    weight = jax.random.uniform(k_w, (hidden_dim, hidden_dim),
                                minval=-bound, maxval=bound, dtype=jnp.float32)
    bias = jax.random.uniform(k_b, (hidden_dim,),
                              minval=-bound, maxval=bound, dtype=jnp.float32)
    y = jax.random.normal(k_y, (batch, hidden_dim), dtype=jnp.float32)

    # One-time parameter prep (bf16 [in, out] weight, f32 [1, H] bias).
    wt_bf, b2d = prepare_params(weight, bias)

    # Default tile (clamps to B here -> single lane-dense block, grid=1).
    out = jax.block_until_ready(layer_forward(y, wt_bf, b2d))
    # Ragged-last-block path: 200 % 128 != 0, no wrapper pad/slice.
    out_ragged = jax.block_until_ready(layer_forward(y, wt_bf, b2d, tile_b=128))

    ref_bf16 = layer_forward_ref_bf16(y, weight, bias)
    ref_f32 = layer_forward_ref(y, weight, bias)

    for o in (out, out_ragged):
        assert o.shape == (batch, hidden_dim)
        # Tight check vs a reference doing the same bf16-operand matmul.
        assert jnp.allclose(o, ref_bf16, atol=1e-3, rtol=1e-3), "mismatch vs bf16 reference"
        # Loose check vs the pure-f32 reference (bf16 operand rounding only).
        assert jnp.allclose(o, ref_f32, atol=5e-2, rtol=5e-2), "mismatch vs f32 reference"

    print("KERNEL_OK")
</pallas_src>

<mosaic_0001>
module attributes {stable_mosaic.version = 11 : i64} {
  func.func @layer_kernel(%arg0: i32, %arg1: memref<200x128xf32, #tpu.memory_space<vmem>>, %arg2: memref<128x128xbf16, #tpu.memory_space<vmem>>, %arg3: memref<1x128xf32, #tpu.memory_space<vmem>>, %arg4: memref<200x128xf32, #tpu.memory_space<vmem>>) attributes {dimension_semantics = [#tpu.dimension_semantics<parallel>], iteration_bounds = array<i64: 1>, scalar_prefetch = 0 : i64, scratch_operands = 0 : i64, tpu.core_type = #tpu.core_type<tc>, window_params = [{transform_indices = @transform_0, window_bounds = array<i64: 200, 128>}, {pipeline_mode = #tpu.pipeline_mode<synchronous>, transform_indices = @transform_1, window_bounds = array<i64: 128, 128>}, {pipeline_mode = #tpu.pipeline_mode<synchronous>, transform_indices = @transform_2, window_bounds = array<i64: 1, 128>}, {transform_indices = @transform_3, window_bounds = array<i64: 200, 128>}]} {
    %c0 = arith.constant 0 : index
    %c0_0 = arith.constant 0 : index
    %0 = vector.load %arg1[%c0, %c0_0] : memref<200x128xf32, #tpu.memory_space<vmem>>, vector<200x128xf32>
    %1 = arith.truncf %0 : vector<200x128xf32> to vector<200x128xbf16>
    %c0_1 = arith.constant 0 : index
    %c0_2 = arith.constant 0 : index
    %2 = vector.load %arg2[%c0_1, %c0_2] : memref<128x128xbf16, #tpu.memory_space<vmem>>, vector<128x128xbf16>
    %cst = arith.constant dense<0.000000e+00> : vector<200x128xf32>
    %3 = tpu.matmul %1, %2, %cst {dimension_numbers = #tpu.dot_dimension_numbers<[1], [0], [0], [1], [0, 0, 1, 1], [], []>} : vector<200x128xbf16>, vector<128x128xbf16>, vector<200x128xf32> -> vector<200x128xf32>
    %c0_3 = arith.constant 0 : index
    %c0_4 = arith.constant 0 : index
    %4 = vector.load %arg3[%c0_3, %c0_4] : memref<1x128xf32, #tpu.memory_space<vmem>>, vector<1x128xf32>
    %5 = vector.broadcast %4 : vector<1x128xf32> to vector<200x128xf32>
    %6 = arith.addf %3, %5 : vector<200x128xf32>
    %cst_5 = arith.constant 0.000000e+00 : f32
    %7 = vector.broadcast %cst_5 : f32 to vector<200x128xf32>
    %8 = arith.maximumf %6, %7 : vector<200x128xf32>
    %9 = arith.addf %8, %0 : vector<200x128xf32>
    %c0_6 = arith.constant 0 : index
    %c0_7 = arith.constant 0 : index
    %10 = vector.load %arg4[%c0_6, %c0_7] : memref<200x128xf32, #tpu.memory_space<vmem>>, vector<200x128xf32>
    tpu.vector_store %arg4[%c0_6, %c0_7], %9 {strides = array<i32>} : memref<200x128xf32, #tpu.memory_space<vmem>>, vector<200x128xf32>,
    return
  }
  func.func @transform_0(%arg0: i32) -> (i32, i32) {
    %c0_i32 = arith.constant 0 : i32
    %c0_i32_0 = arith.constant 0 : i32
    return %arg0, %c0_i32 : i32, i32
  }
  func.func @transform_1(%arg0: i32) -> (i32, i32) {
    %c0_i32 = arith.constant 0 : i32
    %c0_i32_0 = arith.constant 0 : i32
    %c0_i32_1 = arith.constant 0 : i32
    return %c0_i32, %c0_i32_0 : i32, i32
  }
  func.func @transform_2(%arg0: i32) -> (i32, i32) {
    %c0_i32 = arith.constant 0 : i32
    %c0_i32_0 = arith.constant 0 : i32
    %c0_i32_1 = arith.constant 0 : i32
    return %c0_i32, %c0_i32_0 : i32, i32
  }
  func.func @transform_3(%arg0: i32) -> (i32, i32) {
    %c0_i32 = arith.constant 0 : i32
    %c0_i32_0 = arith.constant 0 : i32
    return %arg0, %c0_i32 : i32, i32
  }
}

</mosaic_0001>

<llo_original>
// kernel: layer_forward.1
$region0: #{layer_forward.1}
  #allocation0 [shape = 'u32[]', space=smem, size = 0x4, offset = 0x4, fixed_abs, tag = 'smem constant byte address 0x4 - core index']
  #allocation1 [shape = 'u32[72,128]{1,0:T(1,128)}', space=vmem, size = 0x9000, scoped, tag = 'internal scratch']
  %s0 = inlined_call_operand.hbm [shape: f32[200,128], index: 0, kind: input, shape index: {}]
  %s1 = inlined_call_operand.hbm [shape: bf16[128,128], index: 1, kind: input, shape index: {}]
  %s2 = inlined_call_operand.vmem [shape: f32[1,128], index: 2, kind: input, shape index: {}]
  %s3 = inlined_call_operand.hbm [shape: f32[200,128], index: 3, kind: output, shape index: {}]
  %s4 = sld [smem:[#allocation0]]
  $region30: #{layer_forward.1} parent=0
    _
  %s6 = ssub.s32 1, %s4
  %s7 = scalar_select 0, %s6, %s4
  $region1: #{layer_forward.1} parent=0
    #allocation2 [shape = 'u8[102400]{0}', space=vmem, size = 0x19000, scoped, tag = 'input window, operand 0, single buffered']
    #allocation3 [shape = 's32[1]{0}', space=sflag, size = 0x4, scoped, tag = 'scoped memory for layer_forward.1']
    #allocation4 [shape = 's32[1]{0}', space=sflag, size = 0x4, scoped, tag = 'scoped memory for layer_forward.1']
    #allocation5 [shape = 'u8[32768]{0}', space=vmem, size = 0x8000, scoped, tag = 'input window, operand 1, single buffered']
    #allocation6 [shape = 's32[1]{0}', space=sflag, size = 0x4, scoped, tag = 'scoped memory for layer_forward.1']
    #allocation7 [shape = 'u8[102400]{0}', space=vmem, size = 0x19000, scoped, tag = 'output window, operand 0, single buffered']
    %8 = vsyncpa [#allocation3], 0
    %9 = vsyncpa [#allocation6], 0
    %10 = vsyncpa [#allocation4], 0
    // Predicated region
    $region2: #{layer_forward.1} parent=1 // pred_check
      _
    $region3: #{layer_forward.1} parent=1 // pred_check_branch
      %12 = sbr.rel (0) target = $region5
    $region4: #{layer_forward.1} parent=1 // pred_region
      %14 = vsyncadd [#allocation3], 0
      %s15 = sshll.u32 %s0, 4
      %s16 = int_to_ptr.hbm [resolvable:$true] %s15
      %s17 = sshll.u32 [#allocation2], 4
      %s18 = int_to_ptr.vmem [resolvable:$true] %s17
      %23 = dma.hbm_to_vmem [thread:$0]  %s16, 3200, %s18, [#allocation3], 128, 128, 8
    $region5: #{layer_forward.1} parent=1 // pred_fallthru
      _
    // Predicated region
    $region6: #{layer_forward.1} parent=1 // pred_check
      _
    $region7: #{layer_forward.1} parent=1 // pred_check_branch
      %25 = sbr.rel (0) target = $region9
    $region8: #{layer_forward.1} parent=1 // pred_region
      %27 = vsyncadd [#allocation6], 0
      %s28 = sshll.u32 %s1, 4
      %s29 = int_to_ptr.hbm [resolvable:$true] %s28
      %s30 = sshll.u32 [#allocation5], 4
      %s31 = int_to_ptr.vmem [resolvable:$true] %s30
      %36 = dma.hbm_to_vmem [thread:$0]  %s29, 1024, %s31, [#allocation6], 64, 64, 4
    $region9: #{layer_forward.1} parent=1 // pred_fallthru
      _
    // Predicated region
    $region10: #{layer_forward.1} parent=1 // pred_check
      _
    $region11: #{layer_forward.1} parent=1 // pred_check_branch
      %38 = sbr.rel (0) target = $region13
    $region12: #{layer_forward.1} parent=1 // pred_region
      _
    $region13: #{layer_forward.1} parent=1 // pred_fallthru
      _
    // Predicated region
    $region14: #{layer_forward.1} parent=1 // pred_check
      _
    $region15: #{layer_forward.1} parent=1 // pred_check_branch
      %40 = sbr.rel (0) target = $region17
    $region16: #{layer_forward.1} parent=1 // pred_region
      %42 = dma.done [#allocation3], 3200
    $region17: #{layer_forward.1} parent=1 // pred_fallthru
      _
    // Predicated region
    $region18: #{layer_forward.1} parent=1 // pred_check
      _
    $region19: #{layer_forward.1} parent=1 // pred_check_branch
      %44 = sbr.rel (0) target = $region21
    $region20: #{layer_forward.1} parent=1 // pred_region
      %46 = dma.done [#allocation6], 1024
    $region21: #{layer_forward.1} parent=1 // pred_fallthru
      _
    %v47 = vld [vmem:[#allocation2] sm:$0xff]
    %v48 = vld [vmem:[#allocation2 + $0x8] sm:$0xff]
    %v49 = vld [vmem:[#allocation2 + $0x10] sm:$0xff]
    %v50 = vld [vmem:[#allocation2 + $0x18] sm:$0xff]
    %v51 = vld [vmem:[#allocation2 + $0x20] sm:$0xff]
    %v52 = vld [vmem:[#allocation2 + $0x28] sm:$0xff]
    %v53 = vld [vmem:[#allocation2 + $0x30] sm:$0xff]
    %v54 = vld [vmem:[#allocation2 + $0x38] sm:$0xff]
    %v55 = vld [vmem:[#allocation2 + $0x40] sm:$0xff]
    %v56 = vld [vmem:[#allocation2 + $0x48] sm:$0xff]
    %v57 = vld [vmem:[#allocation2 + $0x50] sm:$0xff]
    %v58 = vld [vmem:[#allocation2 + $0x58] sm:$0xff]
    %v59 = vld [vmem:[#allocation2 + $0x60] sm:$0xff]
    %v60 = vld [vmem:[#allocation2 + $0x68] sm:$0xff]
    %v61 = vld [vmem:[#allocation2 + $0x70] sm:$0xff]
    %v62 = vld [vmem:[#allocation2 + $0x78] sm:$0xff]
    %v63 = vld [vmem:[#allocation2 + $0x80] sm:$0xff]
    %v64 = vld [vmem:[#allocation2 + $0x88] sm:$0xff]
    %v65 = vld [vmem:[#allocation2 + $0x90] sm:$0xff]
    %v66 = vld [vmem:[#allocation2 + $0x98] sm:$0xff]
    %v67 = vld [vmem:[#allocation2 + $0xa0] sm:$0xff]
    %v68 = vld [vmem:[#allocation2 + $0xa8] sm:$0xff]
    %v69 = vld [vmem:[#allocation2 + $0xb0] sm:$0xff]
    %v70 = vld [vmem:[#allocation2 + $0xb8] sm:$0xff]
    %v71 = vld [vmem:[#allocation2 + $0xc0] sm:$0xff]
    %v72 = vpack.c.bf16 %v48, %v47
    %v73 = vpack.c.bf16 %v50, %v49
    %v74 = vpack.c.bf16 %v52, %v51
    %v75 = vpack.c.bf16 %v54, %v53
    %v76 = vpack.c.bf16 %v56, %v55
    %v77 = vpack.c.bf16 %v58, %v57
    %v78 = vpack.c.bf16 %v60, %v59
    %v79 = vpack.c.bf16 %v62, %v61
    %v80 = vpack.c.bf16 %v64, %v63
    %v81 = vpack.c.bf16 %v66, %v65
    %v82 = vpack.c.bf16 %v68, %v67
    %v83 = vpack.c.bf16 %v70, %v69
    %v84 = vpack.c.bf16 %v71, %v71
    %v85 = vld [vmem:[#allocation5] sm:$0xf]
    %v86 = vld [vmem:[#allocation5 + $0x4] sm:$0xf]
    %v87 = vld [vmem:[#allocation5 + $0x8] sm:$0xf]
    %v88 = vld [vmem:[#allocation5 + $0xc] sm:$0xf]
    %v89 = vld [vmem:[#allocation5 + $0x10] sm:$0xf]
    %v90 = vld [vmem:[#allocation5 + $0x14] sm:$0xf]
    %v91 = vld [vmem:[#allocation5 + $0x18] sm:$0xf]
    %v92 = vld [vmem:[#allocation5 + $0x1c] sm:$0xf]
    %v93 = vld [vmem:[#allocation5 + $0x20] sm:$0xf]
    %v94 = vld [vmem:[#allocation5 + $0x24] sm:$0xf]
    %v95 = vld [vmem:[#allocation5 + $0x28] sm:$0xf]
    %v96 = vld [vmem:[#allocation5 + $0x2c] sm:$0xf]
    %v97 = vld [vmem:[#allocation5 + $0x30] sm:$0xf]
    %v98 = vld [vmem:[#allocation5 + $0x34] sm:$0xf]
    %v99 = vld [vmem:[#allocation5 + $0x38] sm:$0xf]
    %v100 = vld [vmem:[#allocation5 + $0x3c] sm:$0xf]
    %v101 = vld [vmem:[%s2] sm:$0x1]
    %v103 = vperm.slane %v101, 0
    %v121 = vunpack.c.l.b16 %v85
    %v122 = vunpack.c.l.b16 %v86
    %v123 = vunpack.c.l.b16 %v87
    %v124 = vunpack.c.l.b16 %v88
    %v125 = vunpack.c.l.b16 %v89
    %v126 = vunpack.c.l.b16 %v90
    %v127 = vunpack.c.l.b16 %v91
    %v128 = vunpack.c.l.b16 %v92
    %v129 = vunpack.c.l.b16 %v93
    %v130 = vunpack.c.l.b16 %v94
    %v131 = vunpack.c.l.b16 %v95
    %v132 = vunpack.c.l.b16 %v96
    %v133 = vunpack.c.l.b16 %v97
    %v134 = vunpack.c.l.b16 %v98
    %v135 = vunpack.c.l.b16 %v99
    %v136 = vunpack.c.l.b16 %v100
    %v137 = vpack.c.b16 %v122, %v121
    %v138 = vpack.c.b16 %v124, %v123
    %v139 = vpack.c.b16 %v126, %v125
    %v140 = vpack.c.b16 %v128, %v127
    %v141 = vpack.c.b16 %v130, %v129
    %v142 = vpack.c.b16 %v132, %v131
    %v143 = vpack.c.b16 %v134, %v133
    %v144 = vpack.c.b16 %v136, %v135
    %153 = vmatpush.bf16.msra.mxu0 %v144
    %154 = vmatpush.bf16.msra.mxu0 %v143
    %155 = vmatpush.bf16.msra.mxu0 %v142
    %156 = vmatpush.bf16.msra.mxu0 %v141
    %157 = vmatpush.bf16.msra.mxu0 %v140
    %158 = vmatpush.bf16.msra.mxu0 %v139
    %159 = vmatpush.bf16.msra.mxu0 %v138
    %160 = vmatpush.bf16.msra.mxu0 %v137
    %161 = vmatmul.bf16.gmra.mxu0 %v72
    %v162 = vpop.f32.mrf.mxu0
    %v163 = vadd.f32 %v103, %v162
    %v164 = vpop.f32.mrf.mxu0
    %v165 = vadd.f32 %v103, %v164
    %166 = vmatmul.bf16.gmra.mxu0 %v73
    %v167 = vpop.f32.mrf.mxu0
    %v168 = vadd.f32 %v103, %v167
    %v169 = vpop.f32.mrf.mxu0
    %v170 = vadd.f32 %v103, %v169
    %171 = vmatmul.bf16.gmra.mxu0 %v74
    %v172 = vpop.f32.mrf.mxu0
    %v173 = vadd.f32 %v103, %v172
    %v174 = vpop.f32.mrf.mxu0
    %v175 = vadd.f32 %v103, %v174
    %176 = vmatmul.bf16.gmra.mxu0 %v75
    %v177 = vpop.f32.mrf.mxu0
    %v178 = vadd.f32 %v103, %v177
    %v179 = vpop.f32.mrf.mxu0
    %v180 = vadd.f32 %v103, %v179
    %181 = vmatmul.bf16.gmra.mxu0 %v76
    %v182 = vpop.f32.mrf.mxu0
    %v183 = vadd.f32 %v103, %v182
    %v184 = vpop.f32.mrf.mxu0
    %v185 = vadd.f32 %v103, %v184
    %186 = vmatmul.bf16.gmra.mxu0 %v77
    %v187 = vpop.f32.mrf.mxu0
    %v188 = vadd.f32 %v103, %v187
    %v189 = vpop.f32.mrf.mxu0
    %v190 = vadd.f32 %v103, %v189
    %191 = vmatmul.bf16.gmra.mxu0 %v78
    %v192 = vpop.f32.mrf.mxu0
    %v193 = vadd.f32 %v103, %v192
    %v194 = vpop.f32.mrf.mxu0
    %v195 = vadd.f32 %v103, %v194
    %196 = vmatmul.bf16.gmra.mxu0 %v79
    %v197 = vpop.f32.mrf.mxu0
    %v198 = vadd.f32 %v103, %v197
    %v199 = vpop.f32.mrf.mxu0
    %v200 = vadd.f32 %v103, %v199
    %201 = vmatmul.bf16.gmra.mxu0 %v80
    %v202 = vpop.f32.mrf.mxu0
    %v203 = vadd.f32 %v103, %v202
    %v204 = vpop.f32.mrf.mxu0
    %v205 = vadd.f32 %v103, %v204
    %206 = vmatmul.bf16.gmra.mxu0 %v81
    %v207 = vpop.f32.mrf.mxu0
    %v208 = vadd.f32 %v103, %v207
    %v209 = vpop.f32.mrf.mxu0
    %v210 = vadd.f32 %v103, %v209
    %211 = vmatmul.bf16.gmra.mxu0 %v82
    %v212 = vpop.f32.mrf.mxu0
    %v213 = vadd.f32 %v103, %v212
    %v214 = vpop.f32.mrf.mxu0
    %v215 = vadd.f32 %v103, %v214
    %216 = vmatmul.bf16.gmra.mxu0 %v83
    %v217 = vpop.f32.mrf.mxu0
    %v218 = vadd.f32 %v103, %v217
    %v219 = vpop.f32.mrf.mxu0
    %v220 = vadd.f32 %v103, %v219
    %221 = vmatmul.bf16.gmra.mxu0 %v84
    %v222 = vpop.f32.mrf.mxu0
    %v223 = vadd.f32 %v103, %v222
    %v224 = vpop.f32.mrf.mxu0
    %225 = vdwg.mxu0
    %v226 = vmax.f32 %v163, 0.0
    %v227 = vmax.f32 %v165, 0.0
    %v228 = vmax.f32 %v168, 0.0
    %v229 = vmax.f32 %v170, 0.0
    %v230 = vmax.f32 %v173, 0.0
    %v231 = vmax.f32 %v175, 0.0
    %v232 = vmax.f32 %v178, 0.0
    %v233 = vmax.f32 %v180, 0.0
    %v234 = vmax.f32 %v183, 0.0
    %v235 = vmax.f32 %v185, 0.0
    %v236 = vmax.f32 %v188, 0.0
    %v237 = vmax.f32 %v190, 0.0
    %v238 = vmax.f32 %v193, 0.0
    %v239 = vmax.f32 %v195, 0.0
    %v240 = vmax.f32 %v198, 0.0
    %v241 = vmax.f32 %v200, 0.0
    %v242 = vmax.f32 %v203, 0.0
    %v243 = vmax.f32 %v205, 0.0
    %v244 = vmax.f32 %v208, 0.0
    %v245 = vmax.f32 %v210, 0.0
    %v246 = vmax.f32 %v213, 0.0
    %v247 = vmax.f32 %v215, 0.0
    %v248 = vmax.f32 %v218, 0.0
    %v249 = vmax.f32 %v220, 0.0
    %v250 = vmax.f32 %v223, 0.0
    %v251 = vadd.f32 %v226, %v47
    %v252 = vadd.f32 %v227, %v48
    %v253 = vadd.f32 %v228, %v49
    %v254 = vadd.f32 %v229, %v50
    %v255 = vadd.f32 %v230, %v51
    %v256 = vadd.f32 %v231, %v52
    %v257 = vadd.f32 %v232, %v53
    %v258 = vadd.f32 %v233, %v54
    %v259 = vadd.f32 %v234, %v55
    %v260 = vadd.f32 %v235, %v56
    %v261 = vadd.f32 %v236, %v57
    %v262 = vadd.f32 %v237, %v58
    %v263 = vadd.f32 %v238, %v59
    %v264 = vadd.f32 %v239, %v60
    %v265 = vadd.f32 %v240, %v61
    %v266 = vadd.f32 %v241, %v62
    %v267 = vadd.f32 %v242, %v63
    %v268 = vadd.f32 %v243, %v64
    %v269 = vadd.f32 %v244, %v65
    %v270 = vadd.f32 %v245, %v66
    %v271 = vadd.f32 %v246, %v67
    %v272 = vadd.f32 %v247, %v68
    %v273 = vadd.f32 %v248, %v69
    %v274 = vadd.f32 %v249, %v70
    %v275 = vadd.f32 %v250, %v71
    %276 = vst [vmem:[#allocation7] sm:$0xff] %v251
    %277 = vst [vmem:[#allocation7 + $0x8] sm:$0xff] %v252
    %278 = vst [vmem:[#allocation7 + $0x10] sm:$0xff] %v253
    %279 = vst [vmem:[#allocation7 + $0x18] sm:$0xff] %v254
    %280 = vst [vmem:[#allocation7 + $0x20] sm:$0xff] %v255
    %281 = vst [vmem:[#allocation7 + $0x28] sm:$0xff] %v256
    %282 = vst [vmem:[#allocation7 + $0x30] sm:$0xff] %v257
    %283 = vst [vmem:[#allocation7 + $0x38] sm:$0xff] %v258
    %284 = vst [vmem:[#allocation7 + $0x40] sm:$0xff] %v259
    %285 = vst [vmem:[#allocation7 + $0x48] sm:$0xff] %v260
    %286 = vst [vmem:[#allocation7 + $0x50] sm:$0xff] %v261
    %287 = vst [vmem:[#allocation7 + $0x58] sm:$0xff] %v262
    %288 = vst [vmem:[#allocation7 + $0x60] sm:$0xff] %v263
    %289 = vst [vmem:[#allocation7 + $0x68] sm:$0xff] %v264
    %290 = vst [vmem:[#allocation7 + $0x70] sm:$0xff] %v265
    %291 = vst [vmem:[#allocation7 + $0x78] sm:$0xff] %v266
    %292 = vst [vmem:[#allocation7 + $0x80] sm:$0xff] %v267
    %293 = vst [vmem:[#allocation7 + $0x88] sm:$0xff] %v268
    %294 = vst [vmem:[#allocation7 + $0x90] sm:$0xff] %v269
    %295 = vst [vmem:[#allocation7 + $0x98] sm:$0xff] %v270
    %296 = vst [vmem:[#allocation7 + $0xa0] sm:$0xff] %v271
    %297 = vst [vmem:[#allocation7 + $0xa8] sm:$0xff] %v272
    %298 = vst [vmem:[#allocation7 + $0xb0] sm:$0xff] %v273
    %299 = vst [vmem:[#allocation7 + $0xb8] sm:$0xff] %v274
    %300 = vst [vmem:[#allocation7 + $0xc0] sm:$0xff] %v275
    // Predicated region
    $region22: #{layer_forward.1} parent=1 // pred_check
      _
    $region23: #{layer_forward.1} parent=1 // pred_check_branch
      %302 = sbr.rel (0) target = $region25
    $region24: #{layer_forward.1} parent=1 // pred_region
      %304 = vsyncadd [#allocation4], 0
      %s305 = sshll.u32 [#allocation7], 4
      %s306 = int_to_ptr.vmem [resolvable:$true] %s305
      %s307 = sshll.u32 %s3, 4
      %s308 = int_to_ptr.hbm [resolvable:$true] %s307
      %313 = dma.vmem_to_hbm [thread:$0]  %s306, 3200, %s308, [#allocation4], 128, 128, 8
    $region25: #{layer_forward.1} parent=1 // pred_fallthru
      _
    // Predicated region
    $region26: #{layer_forward.1} parent=1 // pred_check
      _
    $region27: #{layer_forward.1} parent=1 // pred_check_branch
      %315 = sbr.rel (0) target = $region29
    $region28: #{layer_forward.1} parent=1 // pred_region
      %317 = dma.done [#allocation4], 3200
    $region29: #{layer_forward.1} parent=1 // pred_fallthru
      _
    %318 = vsyncpa [#allocation3], 1
    %319 = vsyncpa [#allocation6], 1
    %320 = vsyncpa [#allocation4], 1

</llo_original>
